<compile_context>
chip_gen: v6e
topology: v6e:2x2x1
jax: 0.10.0
libtpu: 0.0.40
codegen_flags: <defaults>
</compile_context>

<pallas_src>
import jax
import jax.numpy as jnp
from jax.experimental import pallas as pl
from jax.experimental.pallas import tpu as pltpu


# ----------------------------------------------------------------------------- kernel
def _embed_kernel(patch_ref, w_ref, pos_ref, out_ref):
    # patch_ref: (tm, Kp) bf16   packed patch vectors for this row tile
    # w_ref:     (Kp, Ep) bf16   (block-diagonal) patch-embedding weight
    # pos_ref:   (tm, Ep) bf16   position embeddings (+ folded conv bias)
    # out_ref:   (tm, Ep)        output tile
    acc = jnp.dot(patch_ref[...], w_ref[...],
                  preferred_element_type=jnp.float32)          # MXU, f32 accumulate
    out_ref[...] = (acc + pos_ref[...].astype(jnp.float32)).astype(out_ref.dtype)


# ----------------------------------------------------------------------------- helpers
def _round_up(x, m):
    return -(-x // m) * m


def _next_pow2(n):
    p = 1
    while p < n:
        p *= 2
    return p


def _pad_axis(a, axis, new_size):
    pad = new_size - a.shape[axis]
    if pad == 0:
        return a
    widths = [(0, 0)] * a.ndim
    widths[axis] = (0, pad)
    return jnp.pad(a, widths)


def _chip_defaults():
    """(row-tile target, vmem_limit_bytes).

    Conservative (fits v7x's 64 MiB VMEM/TC) unless we positively detect a
    128 MiB-VMEM chip (v5e/v6e), where bigger tiles amortize per-step overhead.
    """
    try:
        kind = jax.devices()[0].device_kind.lower()
    except Exception:  # pragma: no cover
        kind = ""
    if "v5" in kind or "v6" in kind:
        return 1024, 64 * 1024 * 1024
    return 512, 32 * 1024 * 1024


def _pick_row_tile(np_rows, batch, target):
    """Fixed 256-aligned tile; ragged last tile handled by the cdiv grid."""
    tm = np_rows if np_rows <= target else target
    # v7x has 2 TensorCores: guarantee >= 2 grid steps when there is real work.
    if batch * pl.cdiv(np_rows, tm) < 2 and np_rows >= 32:
        tm = max(16, _round_up(pl.cdiv(np_rows, 2), 16))
    return tm


# ----------------------------------------------------------------------------- pallas call
def _pallas_embed(patches_p, w_p, pos_p, out_dtype, tm, vmem_limit, *, optimized):
    B, Np, Kp = patches_p.shape
    Ep = w_p.shape[1]
    # Batch is the innermost (fastest) grid axis: pos block index (j, 0) and the
    # weight block index (0, 0) are constant along it -> Pallas skips re-fetch.
    grid = (pl.cdiv(Np, tm), B)

    w_kwargs = {"pipeline_mode": pl.Buffered(1)} if optimized else {}
    in_specs = [
        pl.BlockSpec((None, tm, Kp), lambda j, b: (b, j, 0)),          # patches
        pl.BlockSpec((Kp, Ep), lambda j, b: (0, 0), **w_kwargs),       # weight (grid-invariant)
        pl.BlockSpec((tm, Ep), lambda j, b: (j, 0)),                   # pos (+bias), batch-invariant
    ]
    out_specs = pl.BlockSpec((None, tm, Ep), lambda j, b: (b, j, 0))

    cost = pl.CostEstimate(
        flops=2 * B * Np * Kp * Ep,                 # the block-diagonal matmul actually executed
        transcendentals=0,
        bytes_accessed=int(patches_p.size * 2 + w_p.size * 2 + pos_p.size * 2
                           + B * Np * Ep * jnp.dtype(out_dtype).itemsize),
    )

    return pl.pallas_call(
        _embed_kernel,
        out_shape=jax.ShapeDtypeStruct((B, Np, Ep), out_dtype),
        grid_spec=pltpu.PrefetchScalarGridSpec(
            num_scalar_prefetch=0,
            grid=grid,
            in_specs=in_specs,
            out_specs=out_specs,
        ),
        compiler_params=pltpu.CompilerParams(
            dimension_semantics=("parallel", "parallel"),
            vmem_limit_bytes=vmem_limit,
            # Let XLA fuse the im2col transpose/cast into the patches input DMA
            # when this wrapper is jitted into a larger computation.
            allow_input_fusion=[True, False, False] if optimized else None,
        ),
        cost_estimate=cost,
    )(patches_p, w_p, pos_p)


# ----------------------------------------------------------------------------- wrapper
def embeddings2d(x, conv_w, conv_b, pos_emb, patch_size, *, row_tile=None):
    """x: (B, C, H, W); conv_w: (E, C, P, P); conv_b: (E,); pos_emb: (1, N, E)."""
    B, C, H, W = x.shape
    E = conv_w.shape[0]
    P = patch_size
    assert H % P == 0 and W % P == 0
    nh, nw = H // P, W // P
    N = nh * nw
    K = C * P * P
    out_dtype = x.dtype

    # --- glue: im2col in bf16; flatten order (C, ph, pw) matches OIHW weights.
    xb = x.astype(jnp.bfloat16)
    patches = xb.reshape(B, C, nh, P, nw, P)
    patches = patches.transpose(0, 2, 4, 1, 3, 5)              # (B, nh, nw, C, P, P)
    patches = patches.reshape(B, N, K)                          # (B, N, K) bf16

    w2d = conv_w.reshape(E, K).T.astype(jnp.float32)            # (K, E)
    posb = (pos_emb.reshape(N, E).astype(jnp.float32)
            + conv_b[None, :].astype(jnp.float32))              # fold conv bias

    # --- lane-dense embed dim: pad E to a divisor (or multiple) of 128.
    if E % 128 == 0:
        Epad = E
    elif E < 128:
        Epad = _next_pow2(E)                                     # divides 128 -> can row-pack
    else:
        Epad = _round_up(E, 128)
    w2d = _pad_axis(w2d, 1, Epad)
    posb = _pad_axis(posb, 1, Epad)

    # --- row packing: pk patches per kernel row so the output last dim is a
    #     128 multiple (unmasked vst).  pk == 1 for real ViT/UNETR configs.
    pk = 128 // Epad if Epad < 128 else 1
    Nrows = _round_up(N, pk)
    patches = _pad_axis(patches, 1, Nrows)
    posb = _pad_axis(posb, 0, Nrows)
    Np, Kp, Ep = Nrows // pk, pk * K, pk * Epad

    patches_p = patches.reshape(B, Np, Kp)                       # free row-major regroup
    if pk == 1:
        w_p = w2d.astype(jnp.bfloat16)
    else:
        w_p = jnp.kron(jnp.eye(pk, dtype=jnp.float32), w2d).astype(jnp.bfloat16)
    pos_p = posb.reshape(Np, Ep).astype(jnp.bfloat16)            # bf16 stream; upcast in-kernel

    tm_target, vmem_limit = _chip_defaults()
    tm = row_tile if row_tile is not None else _pick_row_tile(Np, B, tm_target)

    try:
        out_p = _pallas_embed(patches_p, w_p, pos_p, out_dtype, tm, vmem_limit,
                              optimized=True)
    except Exception:
        # Conservative fallback (no Buffered(1) / allow_input_fusion) for JAX
        # builds where those knobs are unavailable: correctness over tuning.
        out_p = _pallas_embed(patches_p, w_p, pos_p, out_dtype, tm, vmem_limit,
                              optimized=False)

    # Unpack rows (free row-major reshape) and strip E/N padding.
    out = out_p.reshape(B, Nrows, Epad)[:, :N, :E]
    return out


# ----------------------------------------------------------------------------- reference
def _reference(x, conv_w, conv_b, pos_emb, patch_size):
    # Pure-JAX f32 reference: strided conv == the PyTorch patch embedding.
    y = jax.lax.conv_general_dilated(
        x, conv_w,
        window_strides=(patch_size, patch_size),
        padding="VALID",
        dimension_numbers=("NCHW", "OIHW", "NCHW"),
    ) + conv_b[None, :, None, None]
    B, E, nh, nw = y.shape
    y = y.reshape(B, E, nh * nw).transpose(0, 2, 1)              # flatten(2).transpose
    return y + pos_emb


# ----------------------------------------------------------------------------- self-test
if __name__ == "__main__":
    key = jax.random.PRNGKey(0)

    def make_case(k, B, C, H, W, P, E):
        kx, kw, kb, kp = jax.random.split(k, 4)
        N = (H // P) * (W // P)
        x = jax.random.normal(kx, (B, C, H, W), dtype=jnp.float32)
        conv_w = jax.random.normal(kw, (E, C, P, P), dtype=jnp.float32) * 0.05
        conv_b = jax.random.normal(kb, (E,), dtype=jnp.float32) * 0.01
        # nn.Parameter(torch.zeros(1, n_patches, embed_dim)) -- shape reproduced;
        # deterministic random values so the add is actually exercised.
        pos_emb = jax.random.normal(kp, (1, N, E), dtype=jnp.float32) * 0.02
        return x, conv_w, conv_b, pos_emb, P

    k1, k2 = jax.random.split(key)

    # Case 1: module defaults (input_dim=4, embed_dim=32, img 16x16, patch 4).
    case1 = make_case(k1, B=2, C=4, H=16, W=16, P=4, E=32)
    out1 = jax.block_until_ready(embeddings2d(*case1))
    ref1 = _reference(*case1)
    assert out1.shape == ref1.shape, (out1.shape, ref1.shape)
    # bf16 matmul operands / bf16 pos with f32 accumulation -> looser tolerance.
    assert jnp.allclose(out1, ref1, atol=2e-2, rtol=2e-2), "case1 mismatch vs reference"

    # Case 2: odd config exercising E-padding (E=48 -> 64), row packing (pk=2),
    # N-padding (N=25 -> 26) and the ragged cdiv grid (row_tile=8 over 13 rows).
    case2 = make_case(k2, B=1, C=3, H=20, W=20, P=4, E=48)
    out2 = jax.block_until_ready(embeddings2d(*case2, row_tile=8))
    ref2 = _reference(*case2)
    assert out2.shape == ref2.shape, (out2.shape, ref2.shape)
    assert jnp.allclose(out2, ref2, atol=2e-2, rtol=2e-2), "case2 mismatch vs reference"

    print("KERNEL_OK")
</pallas_src>

<mosaic_0001>
module attributes {stable_mosaic.version = 11 : i64} {
  func.func @_embed_kernel(%arg0: i32, %arg1: i32, %arg2: memref<1x4x256xbf16, #tpu.memory_space<vmem>>, %arg3: memref<256x128xbf16, #tpu.memory_space<vmem>>, %arg4: memref<4x128xbf16, #tpu.memory_space<vmem>>, %arg5: memref<1x4x128xf32, #tpu.memory_space<vmem>>) attributes {dimension_semantics = [#tpu.dimension_semantics<parallel>, #tpu.dimension_semantics<parallel>], iteration_bounds = array<i64: 1, 2>, scalar_prefetch = 0 : i64, scratch_operands = 0 : i64, tpu.core_type = #tpu.core_type<tc>, window_params = [{transform_indices = @transform_0, window_bounds = array<i64: 1, 4, 256>}, {pipeline_mode = #tpu.pipeline_mode<synchronous>, transform_indices = @transform_1, window_bounds = array<i64: 256, 128>}, {transform_indices = @transform_2, window_bounds = array<i64: 4, 128>}, {transform_indices = @transform_3, window_bounds = array<i64: 1, 4, 128>}]} {
    %c0 = arith.constant 0 : index
    %c0_0 = arith.constant 0 : index
    %c0_1 = arith.constant 0 : index
    %0 = vector.load %arg2[%c0, %c0_0, %c0_1] : memref<1x4x256xbf16, #tpu.memory_space<vmem>>, vector<1x4x256xbf16>
    %1 = vector.shape_cast %0 : vector<1x4x256xbf16> to vector<4x256xbf16>
    %c0_2 = arith.constant 0 : index
    %c0_3 = arith.constant 0 : index
    %2 = vector.load %arg3[%c0_2, %c0_3] : memref<256x128xbf16, #tpu.memory_space<vmem>>, vector<256x128xbf16>
    %cst = arith.constant dense<0.000000e+00> : vector<4x128xf32>
    %3 = tpu.matmul %1, %2, %cst {dimension_numbers = #tpu.dot_dimension_numbers<[1], [0], [0], [1], [0, 0, 1, 1], [], []>} : vector<4x256xbf16>, vector<256x128xbf16>, vector<4x128xf32> -> vector<4x128xf32>
    %c0_4 = arith.constant 0 : index
    %c0_5 = arith.constant 0 : index
    %4 = vector.load %arg4[%c0_4, %c0_5] : memref<4x128xbf16, #tpu.memory_space<vmem>>, vector<4x128xbf16>
    %5 = arith.extf %4 : vector<4x128xbf16> to vector<4x128xf32>
    %6 = arith.addf %3, %5 : vector<4x128xf32>
    %c0_6 = arith.constant 0 : index
    %c0_7 = arith.constant 0 : index
    %c0_8 = arith.constant 0 : index
    %7 = vector.load %arg5[%c0_6, %c0_7, %c0_8] : memref<1x4x128xf32, #tpu.memory_space<vmem>>, vector<1x4x128xf32>
    %8 = vector.shape_cast %7 : vector<1x4x128xf32> to vector<4x128xf32>
    %9 = vector.shape_cast %6 : vector<4x128xf32> to vector<1x4x128xf32>
    tpu.vector_store %arg5[%c0_6, %c0_7, %c0_8], %9 {strides = array<i32>} : memref<1x4x128xf32, #tpu.memory_space<vmem>>, vector<1x4x128xf32>,
    return
  }
  func.func @transform_0(%arg0: i32, %arg1: i32) -> (i32, i32, i32) {
    %c0_i32 = arith.constant 0 : i32
    %c0_i32_0 = arith.constant 0 : i32
    return %arg1, %arg0, %c0_i32 : i32, i32, i32
  }
  func.func @transform_1(%arg0: i32, %arg1: i32) -> (i32, i32) {
    %c0_i32 = arith.constant 0 : i32
    %c0_i32_0 = arith.constant 0 : i32
    %c0_i32_1 = arith.constant 0 : i32
    return %c0_i32, %c0_i32_0 : i32, i32
  }
  func.func @transform_2(%arg0: i32, %arg1: i32) -> (i32, i32) {
    %c0_i32 = arith.constant 0 : i32
    %c0_i32_0 = arith.constant 0 : i32
    return %arg0, %c0_i32 : i32, i32
  }
  func.func @transform_3(%arg0: i32, %arg1: i32) -> (i32, i32, i32) {
    %c0_i32 = arith.constant 0 : i32
    %c0_i32_0 = arith.constant 0 : i32
    return %arg1, %arg0, %c0_i32 : i32, i32, i32
  }
}

module attributes {stable_mosaic.version = 11 : i64} {
  func.func @_embed_kernel(%arg0: i32, %arg1: i32, %arg2: memref<1x4x256xbf16, #tpu.memory_space<vmem>>, %arg3: memref<256x128xbf16, #tpu.memory_space<vmem>>, %arg4: memref<4x128xbf16, #tpu.memory_space<vmem>>, %arg5: memref<1x4x128xf32, #tpu.memory_space<vmem>>) attributes {dimension_semantics = [#tpu.dimension_semantics<parallel>, #tpu.dimension_semantics<parallel>], iteration_bounds = array<i64: 1, 2>, scalar_prefetch = 0 : i64, scratch_operands = 0 : i64, tpu.core_type = #tpu.core_type<tc>, window_params = [{transform_indices = @transform_0, window_bounds = array<i64: 1, 4, 256>}, {pipeline_mode = #tpu.pipeline_mode<synchronous>, transform_indices = @transform_1, window_bounds = array<i64: 256, 128>}, {transform_indices = @transform_2, window_bounds = array<i64: 4, 128>}, {transform_indices = @transform_3, window_bounds = array<i64: 1, 4, 128>}]} {
    %c0 = arith.constant 0 : index
    %c0_0 = arith.constant 0 : index
    %c0_1 = arith.constant 0 : index
    %0 = vector.load %arg2[%c0, %c0_0, %c0_1] : memref<1x4x256xbf16, #tpu.memory_space<vmem>>, vector<1x4x256xbf16>
    %1 = vector.shape_cast %0 : vector<1x4x256xbf16> to vector<4x256xbf16>
    %c0_2 = arith.constant 0 : index
    %c0_3 = arith.constant 0 : index
    %2 = vector.load %arg3[%c0_2, %c0_3] : memref<256x128xbf16, #tpu.memory_space<vmem>>, vector<256x128xbf16>
    %cst = arith.constant dense<0.000000e+00> : vector<4x128xf32>
    %3 = tpu.matmul %1, %2, %cst {dimension_numbers = #tpu.dot_dimension_numbers<[1], [0], [0], [1], [0, 0, 1, 1], [], []>} : vector<4x256xbf16>, vector<256x128xbf16>, vector<4x128xf32> -> vector<4x128xf32>
    %c0_4 = arith.constant 0 : index
    %c0_5 = arith.constant 0 : index
    %4 = vector.load %arg4[%c0_4, %c0_5] : memref<4x128xbf16, #tpu.memory_space<vmem>>, vector<4x128xbf16>
    %5 = arith.extf %4 : vector<4x128xbf16> to vector<4x128xf32>
    %6 = arith.addf %3, %5 : vector<4x128xf32>
    %c0_6 = arith.constant 0 : index
    %c0_7 = arith.constant 0 : index
    %c0_8 = arith.constant 0 : index
    %7 = vector.load %arg5[%c0_6, %c0_7, %c0_8] : memref<1x4x128xf32, #tpu.memory_space<vmem>>, vector<1x4x128xf32>
    %8 = vector.shape_cast %7 : vector<1x4x128xf32> to vector<4x128xf32>
    %9 = vector.shape_cast %6 : vector<4x128xf32> to vector<1x4x128xf32>
    tpu.vector_store %arg5[%c0_6, %c0_7, %c0_8], %9 {strides = array<i32>} : memref<1x4x128xf32, #tpu.memory_space<vmem>>, vector<1x4x128xf32>,
    return
  }
  func.func @transform_0(%arg0: i32, %arg1: i32) -> (i32, i32, i32) {
    %c0_i32 = arith.constant 0 : i32
    %c0_i32_0 = arith.constant 0 : i32
    return %arg1, %arg0, %c0_i32 : i32, i32, i32
  }
  func.func @transform_1(%arg0: i32, %arg1: i32) -> (i32, i32) {
    %c0_i32 = arith.constant 0 : i32
    %c0_i32_0 = arith.constant 0 : i32
    %c0_i32_1 = arith.constant 0 : i32
    return %c0_i32, %c0_i32_0 : i32, i32
  }
  func.func @transform_2(%arg0: i32, %arg1: i32) -> (i32, i32) {
    %c0_i32 = arith.constant 0 : i32
    %c0_i32_0 = arith.constant 0 : i32
    return %arg0, %c0_i32 : i32, i32
  }
  func.func @transform_3(%arg0: i32, %arg1: i32) -> (i32, i32, i32) {
    %c0_i32 = arith.constant 0 : i32
    %c0_i32_0 = arith.constant 0 : i32
    return %arg1, %arg0, %c0_i32 : i32, i32, i32
  }
}

</mosaic_0001>

<llo_original>
// kernel: tpu_custom_call.1
$region0: #{tpu_custom_call.1}
  #allocation0 [shape = 'u32[]', space=smem, size = 0x4, offset = 0x4, fixed_abs, tag = 'smem constant byte address 0x4 - core index']
  #allocation1 [shape = 'u32[144,128]{1,0:T(1,128)}', space=vmem, size = 0x12000, scoped, tag = 'internal scratch']
  %s0 = inlined_call_operand.hbm [shape: bf16[2,4,256], index: 0, kind: input, shape index: {}]
  %s1 = inlined_call_operand.hbm [shape: bf16[256,128], index: 1, kind: input, shape index: {}]
  %s2 = inlined_call_operand.vmem [shape: bf16[4,128], index: 2, kind: input, shape index: {}]
  %s3 = inlined_call_operand.hbm [shape: f32[2,4,128], index: 3, kind: output, shape index: {}]
  %s4 = sld [smem:[#allocation0]]
  $region53: #{tpu_custom_call.1} parent=0
    _
  %s6 = ssub.s32 1, %s4
  %s7 = scalar_select 0, %s6, %s4
  $region1: #{tpu_custom_call.1} parent=0
    #allocation2 [shape = 'u8[4096]{0}', space=vmem, size = 0x1000, scoped, tag = 'input window, operand 0']
    #allocation3 [shape = 's32[2]{0}', space=sflag, size = 0x8, scoped, tag = 'scoped memory for tpu_custom_call.1']
    #allocation4 [shape = 's32[2]{0}', space=sflag, size = 0x8, scoped, tag = 'scoped memory for tpu_custom_call.1']
    #allocation5 [shape = 'u8[65536]{0}', space=vmem, size = 0x10000, scoped, tag = 'input window, operand 1, single buffered']
    #allocation6 [shape = 's32[1]{0}', space=sflag, size = 0x4, scoped, tag = 'scoped memory for tpu_custom_call.1']
    #allocation7 [shape = 'u8[4096]{0}', space=vmem, size = 0x1000, scoped, tag = 'output window, operand 0']
    %8 = vsyncpa [#allocation3], 0
    %s9 = scalar_lea.sflag [#allocation3], 1
    %10 = vsyncpa %s9, 0
    %11 = vsyncpa [#allocation6], 0
    %12 = vsyncpa [#allocation4], 0
    %s13 = scalar_lea.sflag [#allocation4], 1
    %14 = vsyncpa %s13, 0
    loop: start=0, step=1, limit=4
    $region2: #{tpu_custom_call.1} parent=1 // loop_pre_header
      _
    $region3: #{tpu_custom_call.1} parent=1 // loop_header
      %s16 = sphi 0, %s20
      %p17 = scmp.ge.s32.totalorder %s16, 4
      %s23 = sphi 0, %s35
      %s24 = sphi 0, %s31
      %s25 = sphi 0, %s23
      %s26 = sphi 0, %s24
      %s27 = sphi 0, %s25
      %s28 = sphi 0, %s26
      %s40 = sphi 0, %s42
      %s43 = sphi 0, %s40
      %s44 = sphi 0, %s43
      %s60 = sphi 0, %s44
      %s64 = sphi 0, %s64
      %s66 = sphi 0, %s64
      %s67 = sphi 0, %s66
      %s81 = sphi 0, %s67
      %s87 = sphi 0, %s89
      %s90 = sphi 0, %s87
      %s91 = sphi 0, %s90
      %s107 = sphi 0, %s91
      %s115 = sphi 0, %s117
      %s118 = sphi 0, %s115
      %s119 = sphi 0, %s118
      %s135 = sphi 0, %s119
    $region4: #{tpu_custom_call.1} parent=1 // loop_header_branch
      %19 = sbr.rel (%p17) target = $region8
    $region5: #{tpu_custom_call.1} parent=1 // loop_body
      %s21 = ssub.s32 %s16, 1
      %s22 = ssub.s32 %s16, 2
      %s29 = sadd.s32 1, %s24
      %p30 = scmp.ge.s32.totalorder %s29, 2
      %s31 = scalar_select %p30, 0, %s29
      %s32 = sadd.s32 1, %s23
      %s33 = scalar_select %p30, %s32, %s23
      %p34 = scmp.ge.s32.totalorder %s33, 1
      %s35 = scalar_select %p34, 0, %s33
      %s36 = ssub.s32 %s24, %s31
      %s37 = ssub.s32 %s23, %s35
      %s38 = sor.u32 %s36, %s37
      %p39 = scmp.eq.s32.totalorder %s38, 0
      %s41 = sadd.s32 %s40, 1
      %s42 = scalar_select %p39, %s40, %s41
      %p45 = pneg %p39
      %p46 = scmp.eq.s32.totalorder %s16, 1
      %p47 = por %p45, %p46
      %p48 = scmp.ne.s32.totalorder %s40, %s43
      %p49 = scmp.eq.s32.totalorder %s16, 0
      %p50 = por %p48, %p49
      %p51 = scmp.ne.s32.totalorder %s40, %s43
      %p52 = scmp.eq.s32.totalorder %s21, 1
      %p53 = por %p51, %p52
      %p54 = scmp.ne.s32.totalorder %s43, %s44
      %p55 = scmp.eq.s32.totalorder %s21, 0
      %p56 = por %p54, %p55
      %p57 = scmp.ne.s32.totalorder %s43, %s44
      %p58 = scmp.eq.s32.totalorder %s22, 1
      %p59 = por %p57, %p58
      %p61 = scmp.ne.s32.totalorder %s44, %s60
      %p62 = scmp.eq.s32.totalorder %s22, 0
      %p63 = por %p61, %p62
      %s65 = sadd.s32 %s64, 1
      %p68 = scmp.eq.s32.totalorder %s16, 1
      %p69 = scmp.ne.s32.totalorder %s64, %s66
      %p70 = scmp.eq.s32.totalorder %s16, 0
      %p71 = por %p69, %p70
      %p72 = scmp.ne.s32.totalorder %s64, %s66
      %p73 = scmp.eq.s32.totalorder %s21, 1
      %p74 = por %p72, %p73
      %p75 = scmp.ne.s32.totalorder %s66, %s67
      %p76 = scmp.eq.s32.totalorder %s21, 0
      %p77 = por %p75, %p76
      %p78 = scmp.ne.s32.totalorder %s66, %s67
      %p79 = scmp.eq.s32.totalorder %s22, 1
      %p80 = por %p78, %p79
      %p82 = scmp.ne.s32.totalorder %s67, %s81
      %p83 = scmp.eq.s32.totalorder %s22, 0
      %p84 = por %p82, %p83
      %s85 = ssub.s32 %s23, %s35
      %p86 = scmp.eq.s32.totalorder %s85, 0
      %s88 = sadd.s32 %s87, 1
      %s89 = scalar_select %p86, %s87, %s88
      %p92 = pneg %p86
      %p93 = scmp.eq.s32.totalorder %s16, 1
      %p94 = por %p92, %p93
      %p95 = scmp.ne.s32.totalorder %s87, %s90
      %p96 = scmp.eq.s32.totalorder %s16, 0
      %p97 = por %p95, %p96
      %p98 = scmp.ne.s32.totalorder %s87, %s90
      %p99 = scmp.eq.s32.totalorder %s21, 1
      %p100 = por %p98, %p99
      %p101 = scmp.ne.s32.totalorder %s90, %s91
      %p102 = scmp.eq.s32.totalorder %s21, 0
      %p103 = por %p101, %p102
      %p104 = scmp.ne.s32.totalorder %s90, %s91
      %p105 = scmp.eq.s32.totalorder %s22, 1
      %p106 = por %p104, %p105
      %p108 = scmp.ne.s32.totalorder %s91, %s107
      %p109 = scmp.eq.s32.totalorder %s22, 0
      %p110 = por %p108, %p109
      %s111 = ssub.s32 %s24, %s31
      %s112 = ssub.s32 %s23, %s35
      %s113 = sor.u32 %s111, %s112
      %p114 = scmp.eq.s32.totalorder %s113, 0
      %s116 = sadd.s32 %s115, 1
      %s117 = scalar_select %p114, %s115, %s116
      %p120 = pneg %p114
      %p121 = scmp.eq.s32.totalorder %s16, 1
      %p122 = por %p120, %p121
      %p123 = scmp.ne.s32.totalorder %s115, %s118
      %p124 = scmp.eq.s32.totalorder %s16, 0
      %p125 = por %p123, %p124
      %p126 = scmp.ne.s32.totalorder %s115, %s118
      %p127 = scmp.eq.s32.totalorder %s21, 1
      %p128 = por %p126, %p127
      %p129 = scmp.ne.s32.totalorder %s118, %s119
      %p130 = scmp.eq.s32.totalorder %s21, 0
      %p131 = por %p129, %p130
      %p132 = scmp.ne.s32.totalorder %s118, %s119
      %p133 = scmp.eq.s32.totalorder %s22, 1
      %p134 = por %p132, %p133
      %p136 = scmp.ne.s32.totalorder %s119, %s135
      %p137 = scmp.eq.s32.totalorder %s22, 0
      %p138 = por %p136, %p137
      %p139 = scmp.le.s32.totalorder 1, %s16
      %p140 = scmp.lt.s32.totalorder %s16, 3
      %p141 = pnand %p139, %p140
      %p142 = pneg %p141
      // Predicated region
      $region9: #{tpu_custom_call.1} parent=5 // pred_check
        _
      $region10: #{tpu_custom_call.1} parent=5 // pred_check_branch
        %144 = sbr.rel (%p141) target = $region12
      $region11: #{tpu_custom_call.1} parent=5 // pred_region
        %s145 = ssub.s32 %s16, 1
        // Predicated region
        $region13: #{tpu_custom_call.1} parent=11 // pred_check
          %p146 = pneg %p77
        $region14: #{tpu_custom_call.1} parent=11 // pred_check_branch
          %148 = sbr.rel (%p146) target = $region16
        $region15: #{tpu_custom_call.1} parent=11 // pred_region
          %s150 = ssub.s32 2048, 2048
          %151 = vsyncadd [#allocation6], %s150
          %s152 = sshll.u32 [#allocation5], 4
          %s153 = int_to_ptr.vmem [resolvable:$true] %s152
          %158 = dma.hbm_to_vmem [thread:$0]  %s1, 2048, %s153, [#allocation6], 64, 64, 4
        $region16: #{tpu_custom_call.1} parent=11 // pred_fallthru
          _
        // Predicated region
        $region17: #{tpu_custom_call.1} parent=11 // pred_check
          %p159 = pneg %p103
        $region18: #{tpu_custom_call.1} parent=11 // pred_check_branch
          %161 = sbr.rel (%p159) target = $region20
        $region19: #{tpu_custom_call.1} parent=11 // pred_region
          %p162 = scmp.lt.s32.totalorder %s25, 0
          %s163 = scalar_select %p162, %s25, 0
          %s164 = smul.addr %s163, 2
          %s165 = scalar_lea.vmem %s2, %s164
        $region20: #{tpu_custom_call.1} parent=11 // pred_fallthru
          _
      $region12: #{tpu_custom_call.1} parent=5 // pred_fallthru
        _
      %p166 = scmp.lt.s32.totalorder %s16, 2
      // Predicated region
      $region21: #{tpu_custom_call.1} parent=5 // pred_check
        %p167 = pneg %p166
      $region22: #{tpu_custom_call.1} parent=5 // pred_check_branch
        %169 = sbr.rel (%p167) target = $region24
      $region23: #{tpu_custom_call.1} parent=5 // pred_region
        // Predicated region
        $region25: #{tpu_custom_call.1} parent=23 // pred_check
          %p170 = pneg %p50
        $region26: #{tpu_custom_call.1} parent=23 // pred_check_branch
          %172 = sbr.rel (%p170) target = $region28
        $region27: #{tpu_custom_call.1} parent=23 // pred_region
          %s173 = sand.u32 %s40, 1
          %s174 = scalar_lea.sflag [#allocation3], %s173
          %s175 = sand.u32 %s40, 1
          %s176 = smul.addr %s175, 4
          %s177 = scalar_lea.vmem [#allocation2], %s176
          %s179 = ssub.s32 64, 64
          %180 = vsyncadd %s174, %s179
          %s181 = smul.addr %s23, 2
          %s182 = smul.addr %s24, 2
          %s183 = sadd.s32 %s181, %s182
          %s184 = smul.addr %s183, 32
          %s185 = scalar_lea.hbm %s0, %s184
          %s187 = sshll.u32 %s177, 4
          %s188 = int_to_ptr.vmem [resolvable:$true] %s187
          %190 = dma.hbm_to_vmem [thread:$0]  %s185, 64, %s188, %s174
        $region28: #{tpu_custom_call.1} parent=23 // pred_fallthru
          _
      $region24: #{tpu_custom_call.1} parent=5 // pred_fallthru
        _
      %p191 = scmp.le.s32.totalorder 1, %s16
      %p192 = scmp.lt.s32.totalorder %s16, 3
      %p193 = pnand %p191, %p192
      %p194 = pneg %p193
      // Predicated region
      $region29: #{tpu_custom_call.1} parent=5 // pred_check
        _
      $region30: #{tpu_custom_call.1} parent=5 // pred_check_branch
        %196 = sbr.rel (%p193) target = $region32
      $region31: #{tpu_custom_call.1} parent=5 // pred_region
        %s197 = ssub.s32 %s16, 1
        %s198 = sand.u32 %s43, 1
        %s199 = scalar_lea.sflag [#allocation3], %s198
        %s200 = sand.u32 %s43, 1
        %s201 = smul.addr %s200, 4
        %s202 = scalar_lea.vmem [#allocation2], %s201
        // Predicated region
        $region33: #{tpu_custom_call.1} parent=31 // pred_check
          %p203 = pneg %p56
        $region34: #{tpu_custom_call.1} parent=31 // pred_check_branch
          %205 = sbr.rel (%p203) target = $region36
        $region35: #{tpu_custom_call.1} parent=31 // pred_region
          %206 = dma.done %s199, 64
        $region36: #{tpu_custom_call.1} parent=31 // pred_fallthru
          _
        // Predicated region
        $region37: #{tpu_custom_call.1} parent=31 // pred_check
          %p207 = pneg %p77
        $region38: #{tpu_custom_call.1} parent=31 // pred_check_branch
          %209 = sbr.rel (%p207) target = $region40
        $region39: #{tpu_custom_call.1} parent=31 // pred_region
          %210 = dma.done [#allocation6], 2048
        $region40: #{tpu_custom_call.1} parent=31 // pred_fallthru
          _
        %s211 = sand.u32 %s43, 1
        %s212 = scalar_lea.sflag [#allocation3], %s211
        %s213 = sand.u32 %s43, 1
        %s214 = smul.addr %s213, 4
        %s215 = scalar_lea.vmem [#allocation2], %s214
        %p216 = pneg %p56
        %p217 = pneg %p53
        %p218 = pneg %p77
        %p219 = pneg %p74
        %p220 = scmp.lt.s32.totalorder %s25, 0
        %s221 = scalar_select %p220, %s25, 0
        %s222 = smul.addr %s221, 2
        %s223 = scalar_lea.vmem %s2, %s222
        %p224 = pneg %p103
        %p225 = pneg %p100
        %p226 = pneg %p131
        %p227 = pneg %p128
        %s228 = sand.u32 %s118, 1
        %s229 = scalar_lea.sflag [#allocation4], %s228
        %s230 = sand.u32 %s118, 1
        %s231 = smul.addr %s230, 4
        %s232 = scalar_lea.vmem [#allocation7], %s231
        %p233 = scmp.lt.s32.totalorder %s25, 0
        %s234 = scalar_select %p233, %s25, 0
        %s235 = smul.addr %s234, 2
        %s236 = scalar_lea.vmem %s2, %s235
        %v238 = vld [vmem:[%s202] sm:$0xf]
        %v239 = vld [vmem:[#allocation5] sm:$0xf]
        %v240 = vld [vmem:[#allocation5 + $0x4] sm:$0xf]
        %v241 = vld [vmem:[#allocation5 + $0x8] sm:$0xf]
        %v242 = vld [vmem:[#allocation5 + $0xc] sm:$0xf]
        %v243 = vld [vmem:[#allocation5 + $0x10] sm:$0xf]
        %v244 = vld [vmem:[#allocation5 + $0x14] sm:$0xf]
        %v245 = vld [vmem:[#allocation5 + $0x18] sm:$0xf]
        %v246 = vld [vmem:[#allocation5 + $0x1c] sm:$0xf]
        %v247 = vld [vmem:[#allocation5 + $0x20] sm:$0xf]
        %v248 = vld [vmem:[#allocation5 + $0x24] sm:$0xf]
        %v249 = vld [vmem:[#allocation5 + $0x28] sm:$0xf]
        %v250 = vld [vmem:[#allocation5 + $0x2c] sm:$0xf]
        %v251 = vld [vmem:[#allocation5 + $0x30] sm:$0xf]
        %v252 = vld [vmem:[#allocation5 + $0x34] sm:$0xf]
        %v253 = vld [vmem:[#allocation5 + $0x38] sm:$0xf]
        %v254 = vld [vmem:[#allocation5 + $0x3c] sm:$0xf]
        %v255 = vld [vmem:[#allocation5 + $0x40] sm:$0xf]
        %v256 = vld [vmem:[#allocation5 + $0x44] sm:$0xf]
        %v257 = vld [vmem:[#allocation5 + $0x48] sm:$0xf]
        %v258 = vld [vmem:[#allocation5 + $0x4c] sm:$0xf]
        %v259 = vld [vmem:[#allocation5 + $0x50] sm:$0xf]
        %v260 = vld [vmem:[#allocation5 + $0x54] sm:$0xf]
        %v261 = vld [vmem:[#allocation5 + $0x58] sm:$0xf]
        %v262 = vld [vmem:[#allocation5 + $0x5c] sm:$0xf]
        %v263 = vld [vmem:[#allocation5 + $0x60] sm:$0xf]
        %v264 = vld [vmem:[#allocation5 + $0x64] sm:$0xf]
        %v265 = vld [vmem:[#allocation5 + $0x68] sm:$0xf]
        %v266 = vld [vmem:[#allocation5 + $0x6c] sm:$0xf]
        %v267 = vld [vmem:[#allocation5 + $0x70] sm:$0xf]
        %v268 = vld [vmem:[#allocation5 + $0x74] sm:$0xf]
        %v269 = vld [vmem:[#allocation5 + $0x78] sm:$0xf]
        %v270 = vld [vmem:[#allocation5 + $0x7c] sm:$0xf]
        %v271 = vld [vmem:[%s236] sm:$0x3]
        %v272 = vunpack.c.l.bf16 %v271
        %v275 = vunpack.c.l.s4 1983009808
        %v276 = vunpack.c.0.s8 %v275
        %v277 = vlaneseq
        %v278 = vshrl.u32 %v277, 7
        %v279 = vsub.s32 %v276, %v278
        %v280 = vrot.slane %v238, %v279
        %v281 = vcombine.high %v280, %v280
        %v316 = vunpack.c.l.b16 %v239
        %v317 = vunpack.c.l.b16 %v240
        %v318 = vunpack.c.l.b16 %v241
        %v319 = vunpack.c.l.b16 %v242
        %v320 = vunpack.c.l.b16 %v243
        %v321 = vunpack.c.l.b16 %v244
        %v322 = vunpack.c.l.b16 %v245
        %v323 = vunpack.c.l.b16 %v246
        %v324 = vunpack.c.l.b16 %v247
        %v325 = vunpack.c.l.b16 %v248
        %v326 = vunpack.c.l.b16 %v249
        %v327 = vunpack.c.l.b16 %v250
        %v328 = vunpack.c.l.b16 %v251
        %v329 = vunpack.c.l.b16 %v252
        %v330 = vunpack.c.l.b16 %v253
        %v331 = vunpack.c.l.b16 %v254
        %v332 = vunpack.c.l.b16 %v255
        %v333 = vunpack.c.l.b16 %v256
        %v334 = vunpack.c.l.b16 %v257
        %v335 = vunpack.c.l.b16 %v258
        %v336 = vunpack.c.l.b16 %v259
        %v337 = vunpack.c.l.b16 %v260
        %v338 = vunpack.c.l.b16 %v261
        %v339 = vunpack.c.l.b16 %v262
        %v340 = vunpack.c.l.b16 %v263
        %v341 = vunpack.c.l.b16 %v264
        %v342 = vunpack.c.l.b16 %v265
        %v343 = vunpack.c.l.b16 %v266
        %v344 = vunpack.c.l.b16 %v267
        %v345 = vunpack.c.l.b16 %v268
        %v346 = vunpack.c.l.b16 %v269
        %v347 = vunpack.c.l.b16 %v270
        %v348 = vpack.c.b16 %v317, %v316
        %v349 = vpack.c.b16 %v319, %v318
        %v350 = vpack.c.b16 %v321, %v320
        %v351 = vpack.c.b16 %v323, %v322
        %v352 = vpack.c.b16 %v325, %v324
        %v353 = vpack.c.b16 %v327, %v326
        %v354 = vpack.c.b16 %v329, %v328
        %v355 = vpack.c.b16 %v331, %v330
        %v356 = vpack.c.b16 %v333, %v332
        %v357 = vpack.c.b16 %v335, %v334
        %v358 = vpack.c.b16 %v337, %v336
        %v359 = vpack.c.b16 %v339, %v338
        %v360 = vpack.c.b16 %v341, %v340
        %v361 = vpack.c.b16 %v343, %v342
        %v362 = vpack.c.b16 %v345, %v344
        %v363 = vpack.c.b16 %v347, %v346
        %380 = vmatprep.subr.bf16.mxu0 0
        %381 = vmatpush1.bf16.msra.mxu0 %v355
        %382 = vmatprep.subr.bf16.mxu0 0
        %383 = vmatpush1.bf16.msra.mxu0 %v354
        %384 = vmatprep.subr.bf16.mxu0 0
        %385 = vmatpush1.bf16.msra.mxu0 %v353
        %386 = vmatprep.subr.bf16.mxu0 0
        %387 = vmatpush1.bf16.msra.mxu0 %v352
        %388 = vmatprep.subr.bf16.mxu0 0
        %389 = vmatpush1.bf16.msra.mxu0 %v351
        %390 = vmatprep.subr.bf16.mxu0 0
        %391 = vmatpush1.bf16.msra.mxu0 %v350
        %392 = vmatprep.subr.bf16.mxu0 0
        %393 = vmatpush1.bf16.msra.mxu0 %v349
        %394 = vmatprep.subr.bf16.mxu0 0
        %395 = vmatpush1.bf16.msra.mxu0 %v348
        %396 = vmatprep.subr.bf16.mxu0 0
        %397 = vmatpush2.bf16.msra.mxu0 %v363
        %398 = vmatprep.subr.bf16.mxu0 0
        %399 = vmatpush2.bf16.msra.mxu0 %v362
        %400 = vmatprep.subr.bf16.mxu0 0
        %401 = vmatpush2.bf16.msra.mxu0 %v361
        %402 = vmatprep.subr.bf16.mxu0 0
        %403 = vmatpush2.bf16.msra.mxu0 %v360
        %404 = vmatprep.subr.bf16.mxu0 0
        %405 = vmatpush2.bf16.msra.mxu0 %v359
        %406 = vmatprep.subr.bf16.mxu0 0
        %407 = vmatpush2.bf16.msra.mxu0 %v358
        %408 = vmatprep.subr.bf16.mxu0 0
        %409 = vmatpush2.bf16.msra.mxu0 %v357
        %410 = vmatprep.subr.bf16.mxu0 0
        %411 = vmatpush2.bf16.msra.mxu0 %v356
        %412 = vmatprep.mubr.bf16.mxu0 %v281
        %413 = vmatmul.mubr.bf16.gmra.mxu0 %v280
        %v414 = vpop.f32.mrf.mxu0
        %v415 = vadd.f32 %v272, %v414
        %v416 = vpop.f32.mrf.mxu0
        %v417 = vpop.f32.mrf.mxu0
        %v418 = vpop.f32.mrf.mxu0
        %419 = vdwg.mxu0
        %420 = vst [vmem:[%s232] sm:$0xf] %v415
        %s421 = sand.u32 %s118, 1
        %s422 = scalar_lea.sflag [#allocation4], %s421
        %s423 = sand.u32 %s118, 1
        %s424 = smul.addr %s423, 4
        %s425 = scalar_lea.vmem [#allocation7], %s424
        // Predicated region
        $region41: #{tpu_custom_call.1} parent=31 // pred_check
          %p426 = pneg %p128
        $region42: #{tpu_custom_call.1} parent=31 // pred_check_branch
          %428 = sbr.rel (%p426) target = $region44
        $region43: #{tpu_custom_call.1} parent=31 // pred_region
          %s430 = ssub.s32 64, 64
          %431 = vsyncadd %s422, %s430
          %s432 = sadd.s32 %s25, %s26
          %s433 = smul.addr %s432, 64
          %s434 = scalar_lea.hbm %s3, %s433
          %s436 = sshll.u32 %s425, 4
          %s437 = int_to_ptr.vmem [resolvable:$true] %s436
          %439 = dma.vmem_to_hbm [thread:$0]  %s437, 64, %s434, %s422
        $region44: #{tpu_custom_call.1} parent=31 // pred_fallthru
          _
      $region32: #{tpu_custom_call.1} parent=5 // pred_fallthru
        _
      %p440 = scmp.le.s32.totalorder 2, %s16
      // Predicated region
      $region45: #{tpu_custom_call.1} parent=5 // pred_check
        %p441 = pneg %p440
      $region46: #{tpu_custom_call.1} parent=5 // pred_check_branch
        %443 = sbr.rel (%p441) target = $region48
      $region47: #{tpu_custom_call.1} parent=5 // pred_region
        %s444 = ssub.s32 %s16, 2
        // Predicated region
        $region49: #{tpu_custom_call.1} parent=47 // pred_check
          %p445 = pneg %p134
        $region50: #{tpu_custom_call.1} parent=47 // pred_check_branch
          %447 = sbr.rel (%p445) target = $region52
        $region51: #{tpu_custom_call.1} parent=47 // pred_region
          %s448 = sand.u32 %s119, 1
          %s449 = scalar_lea.sflag [#allocation4], %s448
          %s450 = sand.u32 %s119, 1
          %s451 = smul.addr %s450, 4
          %s452 = scalar_lea.vmem [#allocation7], %s451
          %453 = dma.done %s449, 64
        $region52: #{tpu_custom_call.1} parent=47 // pred_fallthru
          _
      $region48: #{tpu_custom_call.1} parent=5 // pred_fallthru
        _
    $region6: #{tpu_custom_call.1} parent=1 // loop_footer
      %s20 = sadd.s32 1, %s16
    $region7: #{tpu_custom_call.1} parent=1 // loop_footer_branch
      %15 = sbr.rel target = $region3
    $region8: #{tpu_custom_call.1} parent=1 // loop_exit
      _
    %454 = vsyncpa [#allocation3], 1
    %s455 = scalar_lea.sflag [#allocation3], 1
    %456 = vsyncpa %s455, 1
    %457 = vsyncpa [#allocation6], 1
    %458 = vsyncpa [#allocation4], 1
    %s459 = scalar_lea.sflag [#allocation4], 1
    %460 = vsyncpa %s459, 1

// kernel: tpu_custom_call.1
$region0: #{tpu_custom_call.1}
  #allocation0 [shape = 'u32[]', space=smem, size = 0x4, offset = 0x4, fixed_abs, tag = 'smem constant byte address 0x4 - core index']
  #allocation1 [shape = 'u32[144,128]{1,0:T(1,128)}', space=vmem, size = 0x12000, scoped, tag = 'internal scratch']
  %s0 = inlined_call_operand.hbm [shape: bf16[2,4,256], index: 0, kind: input, shape index: {}]
  %s1 = inlined_call_operand.hbm [shape: bf16[256,128], index: 1, kind: input, shape index: {}]
  %s2 = inlined_call_operand.vmem [shape: bf16[4,128], index: 2, kind: input, shape index: {}]
  %s3 = inlined_call_operand.hbm [shape: f32[2,4,128], index: 3, kind: output, shape index: {}]
  %s4 = sld [smem:[#allocation0]]
  $region53: #{tpu_custom_call.1} parent=0
    _
  %s6 = ssub.s32 1, %s4
  %s7 = scalar_select 0, %s6, %s4
  $region1: #{tpu_custom_call.1} parent=0
    #allocation2 [shape = 'u8[4096]{0}', space=vmem, size = 0x1000, scoped, tag = 'input window, operand 0']
    #allocation3 [shape = 's32[2]{0}', space=sflag, size = 0x8, scoped, tag = 'scoped memory for tpu_custom_call.1']
    #allocation4 [shape = 's32[2]{0}', space=sflag, size = 0x8, scoped, tag = 'scoped memory for tpu_custom_call.1']
    #allocation5 [shape = 'u8[65536]{0}', space=vmem, size = 0x10000, scoped, tag = 'input window, operand 1, single buffered']
    #allocation6 [shape = 's32[1]{0}', space=sflag, size = 0x4, scoped, tag = 'scoped memory for tpu_custom_call.1']
    #allocation7 [shape = 'u8[4096]{0}', space=vmem, size = 0x1000, scoped, tag = 'output window, operand 0']
    %8 = vsyncpa [#allocation3], 0
    %s9 = scalar_lea.sflag [#allocation3], 1
    %10 = vsyncpa %s9, 0
    %11 = vsyncpa [#allocation6], 0
    %12 = vsyncpa [#allocation4], 0
    %s13 = scalar_lea.sflag [#allocation4], 1
    %14 = vsyncpa %s13, 0
    loop: start=0, step=1, limit=4
    $region2: #{tpu_custom_call.1} parent=1 // loop_pre_header
      _
    $region3: #{tpu_custom_call.1} parent=1 // loop_header
      %s16 = sphi 0, %s20
      %p17 = scmp.ge.s32.totalorder %s16, 4
      %s23 = sphi 0, %s35
      %s24 = sphi 0, %s31
      %s25 = sphi 0, %s23
      %s26 = sphi 0, %s24
      %s27 = sphi 0, %s25
      %s28 = sphi 0, %s26
      %s40 = sphi 0, %s42
      %s43 = sphi 0, %s40
      %s44 = sphi 0, %s43
      %s60 = sphi 0, %s44
      %s64 = sphi 0, %s64
      %s66 = sphi 0, %s64
      %s67 = sphi 0, %s66
      %s81 = sphi 0, %s67
      %s87 = sphi 0, %s89
      %s90 = sphi 0, %s87
      %s91 = sphi 0, %s90
      %s107 = sphi 0, %s91
      %s115 = sphi 0, %s117
      %s118 = sphi 0, %s115
      %s119 = sphi 0, %s118
      %s135 = sphi 0, %s119
    $region4: #{tpu_custom_call.1} parent=1 // loop_header_branch
      %19 = sbr.rel (%p17) target = $region8
    $region5: #{tpu_custom_call.1} parent=1 // loop_body
      %s21 = ssub.s32 %s16, 1
      %s22 = ssub.s32 %s16, 2
      %s29 = sadd.s32 1, %s24
      %p30 = scmp.ge.s32.totalorder %s29, 2
      %s31 = scalar_select %p30, 0, %s29
      %s32 = sadd.s32 1, %s23
      %s33 = scalar_select %p30, %s32, %s23
      %p34 = scmp.ge.s32.totalorder %s33, 1
      %s35 = scalar_select %p34, 0, %s33
      %s36 = ssub.s32 %s24, %s31
      %s37 = ssub.s32 %s23, %s35
      %s38 = sor.u32 %s36, %s37
      %p39 = scmp.eq.s32.totalorder %s38, 0
      %s41 = sadd.s32 %s40, 1
      %s42 = scalar_select %p39, %s40, %s41
      %p45 = pneg %p39
      %p46 = scmp.eq.s32.totalorder %s16, 1
      %p47 = por %p45, %p46
      %p48 = scmp.ne.s32.totalorder %s40, %s43
      %p49 = scmp.eq.s32.totalorder %s16, 0
      %p50 = por %p48, %p49
      %p51 = scmp.ne.s32.totalorder %s40, %s43
      %p52 = scmp.eq.s32.totalorder %s21, 1
      %p53 = por %p51, %p52
      %p54 = scmp.ne.s32.totalorder %s43, %s44
      %p55 = scmp.eq.s32.totalorder %s21, 0
      %p56 = por %p54, %p55
      %p57 = scmp.ne.s32.totalorder %s43, %s44
      %p58 = scmp.eq.s32.totalorder %s22, 1
      %p59 = por %p57, %p58
      %p61 = scmp.ne.s32.totalorder %s44, %s60
      %p62 = scmp.eq.s32.totalorder %s22, 0
      %p63 = por %p61, %p62
      %s65 = sadd.s32 %s64, 1
      %p68 = scmp.eq.s32.totalorder %s16, 1
      %p69 = scmp.ne.s32.totalorder %s64, %s66
      %p70 = scmp.eq.s32.totalorder %s16, 0
      %p71 = por %p69, %p70
      %p72 = scmp.ne.s32.totalorder %s64, %s66
      %p73 = scmp.eq.s32.totalorder %s21, 1
      %p74 = por %p72, %p73
      %p75 = scmp.ne.s32.totalorder %s66, %s67
      %p76 = scmp.eq.s32.totalorder %s21, 0
      %p77 = por %p75, %p76
      %p78 = scmp.ne.s32.totalorder %s66, %s67
      %p79 = scmp.eq.s32.totalorder %s22, 1
      %p80 = por %p78, %p79
      %p82 = scmp.ne.s32.totalorder %s67, %s81
      %p83 = scmp.eq.s32.totalorder %s22, 0
      %p84 = por %p82, %p83
      %s85 = ssub.s32 %s23, %s35
      %p86 = scmp.eq.s32.totalorder %s85, 0
      %s88 = sadd.s32 %s87, 1
      %s89 = scalar_select %p86, %s87, %s88
      %p92 = pneg %p86
      %p93 = scmp.eq.s32.totalorder %s16, 1
      %p94 = por %p92, %p93
      %p95 = scmp.ne.s32.totalorder %s87, %s90
      %p96 = scmp.eq.s32.totalorder %s16, 0
      %p97 = por %p95, %p96
      %p98 = scmp.ne.s32.totalorder %s87, %s90
      %p99 = scmp.eq.s32.totalorder %s21, 1
      %p100 = por %p98, %p99
      %p101 = scmp.ne.s32.totalorder %s90, %s91
      %p102 = scmp.eq.s32.totalorder %s21, 0
      %p103 = por %p101, %p102
      %p104 = scmp.ne.s32.totalorder %s90, %s91
      %p105 = scmp.eq.s32.totalorder %s22, 1
      %p106 = por %p104, %p105
      %p108 = scmp.ne.s32.totalorder %s91, %s107
      %p109 = scmp.eq.s32.totalorder %s22, 0
      %p110 = por %p108, %p109
      %s111 = ssub.s32 %s24, %s31
      %s112 = ssub.s32 %s23, %s35
      %s113 = sor.u32 %s111, %s112
      %p114 = scmp.eq.s32.totalorder %s113, 0
      %s116 = sadd.s32 %s115, 1
      %s117 = scalar_select %p114, %s115, %s116
      %p120 = pneg %p114
      %p121 = scmp.eq.s32.totalorder %s16, 1
      %p122 = por %p120, %p121
      %p123 = scmp.ne.s32.totalorder %s115, %s118
      %p124 = scmp.eq.s32.totalorder %s16, 0
      %p125 = por %p123, %p124
      %p126 = scmp.ne.s32.totalorder %s115, %s118
      %p127 = scmp.eq.s32.totalorder %s21, 1
      %p128 = por %p126, %p127
      %p129 = scmp.ne.s32.totalorder %s118, %s119
      %p130 = scmp.eq.s32.totalorder %s21, 0
      %p131 = por %p129, %p130
      %p132 = scmp.ne.s32.totalorder %s118, %s119
      %p133 = scmp.eq.s32.totalorder %s22, 1
      %p134 = por %p132, %p133
      %p136 = scmp.ne.s32.totalorder %s119, %s135
      %p137 = scmp.eq.s32.totalorder %s22, 0
      %p138 = por %p136, %p137
      %p139 = scmp.le.s32.totalorder 1, %s16
      %p140 = scmp.lt.s32.totalorder %s16, 3
      %p141 = pnand %p139, %p140
      %p142 = pneg %p141
      // Predicated region
      $region9: #{tpu_custom_call.1} parent=5 // pred_check
        _
      $region10: #{tpu_custom_call.1} parent=5 // pred_check_branch
        %144 = sbr.rel (%p141) target = $region12
      $region11: #{tpu_custom_call.1} parent=5 // pred_region
        %s145 = ssub.s32 %s16, 1
        // Predicated region
        $region13: #{tpu_custom_call.1} parent=11 // pred_check
          %p146 = pneg %p77
        $region14: #{tpu_custom_call.1} parent=11 // pred_check_branch
          %148 = sbr.rel (%p146) target = $region16
        $region15: #{tpu_custom_call.1} parent=11 // pred_region
          %s150 = ssub.s32 2048, 2048
          %151 = vsyncadd [#allocation6], %s150
          %s152 = sshll.u32 [#allocation5], 4
          %s153 = int_to_ptr.vmem [resolvable:$true] %s152
          %158 = dma.hbm_to_vmem [thread:$0]  %s1, 2048, %s153, [#allocation6], 64, 64, 4
        $region16: #{tpu_custom_call.1} parent=11 // pred_fallthru
          _
        // Predicated region
        $region17: #{tpu_custom_call.1} parent=11 // pred_check
          %p159 = pneg %p103
        $region18: #{tpu_custom_call.1} parent=11 // pred_check_branch
          %161 = sbr.rel (%p159) target = $region20
        $region19: #{tpu_custom_call.1} parent=11 // pred_region
          %p162 = scmp.lt.s32.totalorder %s25, 0
          %s163 = scalar_select %p162, %s25, 0
          %s164 = smul.addr %s163, 2
          %s165 = scalar_lea.vmem %s2, %s164
        $region20: #{tpu_custom_call.1} parent=11 // pred_fallthru
          _
      $region12: #{tpu_custom_call.1} parent=5 // pred_fallthru
        _
      %p166 = scmp.lt.s32.totalorder %s16, 2
      // Predicated region
      $region21: #{tpu_custom_call.1} parent=5 // pred_check
        %p167 = pneg %p166
      $region22: #{tpu_custom_call.1} parent=5 // pred_check_branch
        %169 = sbr.rel (%p167) target = $region24
      $region23: #{tpu_custom_call.1} parent=5 // pred_region
        // Predicated region
        $region25: #{tpu_custom_call.1} parent=23 // pred_check
          %p170 = pneg %p50
        $region26: #{tpu_custom_call.1} parent=23 // pred_check_branch
          %172 = sbr.rel (%p170) target = $region28
        $region27: #{tpu_custom_call.1} parent=23 // pred_region
          %s173 = sand.u32 %s40, 1
          %s174 = scalar_lea.sflag [#allocation3], %s173
          %s175 = sand.u32 %s40, 1
          %s176 = smul.addr %s175, 4
          %s177 = scalar_lea.vmem [#allocation2], %s176
          %s179 = ssub.s32 64, 64
          %180 = vsyncadd %s174, %s179
          %s181 = smul.addr %s23, 2
          %s182 = smul.addr %s24, 2
          %s183 = sadd.s32 %s181, %s182
          %s184 = smul.addr %s183, 32
          %s185 = scalar_lea.hbm %s0, %s184
          %s187 = sshll.u32 %s177, 4
          %s188 = int_to_ptr.vmem [resolvable:$true] %s187
          %190 = dma.hbm_to_vmem [thread:$0]  %s185, 64, %s188, %s174
        $region28: #{tpu_custom_call.1} parent=23 // pred_fallthru
          _
      $region24: #{tpu_custom_call.1} parent=5 // pred_fallthru
        _
      %p191 = scmp.le.s32.totalorder 1, %s16
      %p192 = scmp.lt.s32.totalorder %s16, 3
      %p193 = pnand %p191, %p192
      %p194 = pneg %p193
      // Predicated region
      $region29: #{tpu_custom_call.1} parent=5 // pred_check
        _
      $region30: #{tpu_custom_call.1} parent=5 // pred_check_branch
        %196 = sbr.rel (%p193) target = $region32
      $region31: #{tpu_custom_call.1} parent=5 // pred_region
        %s197 = ssub.s32 %s16, 1
        %s198 = sand.u32 %s43, 1
        %s199 = scalar_lea.sflag [#allocation3], %s198
        %s200 = sand.u32 %s43, 1
        %s201 = smul.addr %s200, 4
        %s202 = scalar_lea.vmem [#allocation2], %s201
        // Predicated region
        $region33: #{tpu_custom_call.1} parent=31 // pred_check
          %p203 = pneg %p56
        $region34: #{tpu_custom_call.1} parent=31 // pred_check_branch
          %205 = sbr.rel (%p203) target = $region36
        $region35: #{tpu_custom_call.1} parent=31 // pred_region
          %206 = dma.done %s199, 64
        $region36: #{tpu_custom_call.1} parent=31 // pred_fallthru
          _
        // Predicated region
        $region37: #{tpu_custom_call.1} parent=31 // pred_check
          %p207 = pneg %p77
        $region38: #{tpu_custom_call.1} parent=31 // pred_check_branch
          %209 = sbr.rel (%p207) target = $region40
        $region39: #{tpu_custom_call.1} parent=31 // pred_region
          %210 = dma.done [#allocation6], 2048
        $region40: #{tpu_custom_call.1} parent=31 // pred_fallthru
          _
        %s211 = sand.u32 %s43, 1
        %s212 = scalar_lea.sflag [#allocation3], %s211
        %s213 = sand.u32 %s43, 1
        %s214 = smul.addr %s213, 4
        %s215 = scalar_lea.vmem [#allocation2], %s214
        %p216 = pneg %p56
        %p217 = pneg %p53
        %p218 = pneg %p77
        %p219 = pneg %p74
        %p220 = scmp.lt.s32.totalorder %s25, 0
        %s221 = scalar_select %p220, %s25, 0
        %s222 = smul.addr %s221, 2
        %s223 = scalar_lea.vmem %s2, %s222
        %p224 = pneg %p103
        %p225 = pneg %p100
        %p226 = pneg %p131
        %p227 = pneg %p128
        %s228 = sand.u32 %s118, 1
        %s229 = scalar_lea.sflag [#allocation4], %s228
        %s230 = sand.u32 %s118, 1
        %s231 = smul.addr %s230, 4
        %s232 = scalar_lea.vmem [#allocation7], %s231
        %p233 = scmp.lt.s32.totalorder %s25, 0
        %s234 = scalar_select %p233, %s25, 0
        %s235 = smul.addr %s234, 2
        %s236 = scalar_lea.vmem %s2, %s235
        %v238 = vld [vmem:[%s202] sm:$0xf]
        %v239 = vld [vmem:[#allocation5] sm:$0xf]
        %v240 = vld [vmem:[#allocation5 + $0x4] sm:$0xf]
        %v241 = vld [vmem:[#allocation5 + $0x8] sm:$0xf]
        %v242 = vld [vmem:[#allocation5 + $0xc] sm:$0xf]
        %v243 = vld [vmem:[#allocation5 + $0x10] sm:$0xf]
        %v244 = vld [vmem:[#allocation5 + $0x14] sm:$0xf]
        %v245 = vld [vmem:[#allocation5 + $0x18] sm:$0xf]
        %v246 = vld [vmem:[#allocation5 + $0x1c] sm:$0xf]
        %v247 = vld [vmem:[#allocation5 + $0x20] sm:$0xf]
        %v248 = vld [vmem:[#allocation5 + $0x24] sm:$0xf]
        %v249 = vld [vmem:[#allocation5 + $0x28] sm:$0xf]
        %v250 = vld [vmem:[#allocation5 + $0x2c] sm:$0xf]
        %v251 = vld [vmem:[#allocation5 + $0x30] sm:$0xf]
        %v252 = vld [vmem:[#allocation5 + $0x34] sm:$0xf]
        %v253 = vld [vmem:[#allocation5 + $0x38] sm:$0xf]
        %v254 = vld [vmem:[#allocation5 + $0x3c] sm:$0xf]
        %v255 = vld [vmem:[#allocation5 + $0x40] sm:$0xf]
        %v256 = vld [vmem:[#allocation5 + $0x44] sm:$0xf]
        %v257 = vld [vmem:[#allocation5 + $0x48] sm:$0xf]
        %v258 = vld [vmem:[#allocation5 + $0x4c] sm:$0xf]
        %v259 = vld [vmem:[#allocation5 + $0x50] sm:$0xf]
        %v260 = vld [vmem:[#allocation5 + $0x54] sm:$0xf]
        %v261 = vld [vmem:[#allocation5 + $0x58] sm:$0xf]
        %v262 = vld [vmem:[#allocation5 + $0x5c] sm:$0xf]
        %v263 = vld [vmem:[#allocation5 + $0x60] sm:$0xf]
        %v264 = vld [vmem:[#allocation5 + $0x64] sm:$0xf]
        %v265 = vld [vmem:[#allocation5 + $0x68] sm:$0xf]
        %v266 = vld [vmem:[#allocation5 + $0x6c] sm:$0xf]
        %v267 = vld [vmem:[#allocation5 + $0x70] sm:$0xf]
        %v268 = vld [vmem:[#allocation5 + $0x74] sm:$0xf]
        %v269 = vld [vmem:[#allocation5 + $0x78] sm:$0xf]
        %v270 = vld [vmem:[#allocation5 + $0x7c] sm:$0xf]
        %v271 = vld [vmem:[%s236] sm:$0x3]
        %v272 = vunpack.c.l.bf16 %v271
        %v275 = vunpack.c.l.s4 1983009808
        %v276 = vunpack.c.0.s8 %v275
        %v277 = vlaneseq
        %v278 = vshrl.u32 %v277, 7
        %v279 = vsub.s32 %v276, %v278
        %v280 = vrot.slane %v238, %v279
        %v281 = vcombine.high %v280, %v280
        %v316 = vunpack.c.l.b16 %v239
        %v317 = vunpack.c.l.b16 %v240
        %v318 = vunpack.c.l.b16 %v241
        %v319 = vunpack.c.l.b16 %v242
        %v320 = vunpack.c.l.b16 %v243
        %v321 = vunpack.c.l.b16 %v244
        %v322 = vunpack.c.l.b16 %v245
        %v323 = vunpack.c.l.b16 %v246
        %v324 = vunpack.c.l.b16 %v247
        %v325 = vunpack.c.l.b16 %v248
        %v326 = vunpack.c.l.b16 %v249
        %v327 = vunpack.c.l.b16 %v250
        %v328 = vunpack.c.l.b16 %v251
        %v329 = vunpack.c.l.b16 %v252
        %v330 = vunpack.c.l.b16 %v253
        %v331 = vunpack.c.l.b16 %v254
        %v332 = vunpack.c.l.b16 %v255
        %v333 = vunpack.c.l.b16 %v256
        %v334 = vunpack.c.l.b16 %v257
        %v335 = vunpack.c.l.b16 %v258
        %v336 = vunpack.c.l.b16 %v259
        %v337 = vunpack.c.l.b16 %v260
        %v338 = vunpack.c.l.b16 %v261
        %v339 = vunpack.c.l.b16 %v262
        %v340 = vunpack.c.l.b16 %v263
        %v341 = vunpack.c.l.b16 %v264
        %v342 = vunpack.c.l.b16 %v265
        %v343 = vunpack.c.l.b16 %v266
        %v344 = vunpack.c.l.b16 %v267
        %v345 = vunpack.c.l.b16 %v268
        %v346 = vunpack.c.l.b16 %v269
        %v347 = vunpack.c.l.b16 %v270
        %v348 = vpack.c.b16 %v317, %v316
        %v349 = vpack.c.b16 %v319, %v318
        %v350 = vpack.c.b16 %v321, %v320
        %v351 = vpack.c.b16 %v323, %v322
        %v352 = vpack.c.b16 %v325, %v324
        %v353 = vpack.c.b16 %v327, %v326
        %v354 = vpack.c.b16 %v329, %v328
        %v355 = vpack.c.b16 %v331, %v330
        %v356 = vpack.c.b16 %v333, %v332
        %v357 = vpack.c.b16 %v335, %v334
        %v358 = vpack.c.b16 %v337, %v336
        %v359 = vpack.c.b16 %v339, %v338
        %v360 = vpack.c.b16 %v341, %v340
        %v361 = vpack.c.b16 %v343, %v342
        %v362 = vpack.c.b16 %v345, %v344
        %v363 = vpack.c.b16 %v347, %v346
        %380 = vmatprep.subr.bf16.mxu0 0
        %381 = vmatpush1.bf16.msra.mxu0 %v355
        %382 = vmatprep.subr.bf16.mxu0 0
        %383 = vmatpush1.bf16.msra.mxu0 %v354
        %384 = vmatprep.subr.bf16.mxu0 0
        %385 = vmatpush1.bf16.msra.mxu0 %v353
        %386 = vmatprep.subr.bf16.mxu0 0
        %387 = vmatpush1.bf16.msra.mxu0 %v352
        %388 = vmatprep.subr.bf16.mxu0 0
        %389 = vmatpush1.bf16.msra.mxu0 %v351
        %390 = vmatprep.subr.bf16.mxu0 0
        %391 = vmatpush1.bf16.msra.mxu0 %v350
        %392 = vmatprep.subr.bf16.mxu0 0
        %393 = vmatpush1.bf16.msra.mxu0 %v349
        %394 = vmatprep.subr.bf16.mxu0 0
        %395 = vmatpush1.bf16.msra.mxu0 %v348
        %396 = vmatprep.subr.bf16.mxu0 0
        %397 = vmatpush2.bf16.msra.mxu0 %v363
        %398 = vmatprep.subr.bf16.mxu0 0
        %399 = vmatpush2.bf16.msra.mxu0 %v362
        %400 = vmatprep.subr.bf16.mxu0 0
        %401 = vmatpush2.bf16.msra.mxu0 %v361
        %402 = vmatprep.subr.bf16.mxu0 0
        %403 = vmatpush2.bf16.msra.mxu0 %v360
        %404 = vmatprep.subr.bf16.mxu0 0
        %405 = vmatpush2.bf16.msra.mxu0 %v359
        %406 = vmatprep.subr.bf16.mxu0 0
        %407 = vmatpush2.bf16.msra.mxu0 %v358
        %408 = vmatprep.subr.bf16.mxu0 0
        %409 = vmatpush2.bf16.msra.mxu0 %v357
        %410 = vmatprep.subr.bf16.mxu0 0
        %411 = vmatpush2.bf16.msra.mxu0 %v356
        %412 = vmatprep.mubr.bf16.mxu0 %v281
        %413 = vmatmul.mubr.bf16.gmra.mxu0 %v280
        %v414 = vpop.f32.mrf.mxu0
        %v415 = vadd.f32 %v272, %v414
        %v416 = vpop.f32.mrf.mxu0
        %v417 = vpop.f32.mrf.mxu0
        %v418 = vpop.f32.mrf.mxu0
        %419 = vdwg.mxu0
        %420 = vst [vmem:[%s232] sm:$0xf] %v415
        %s421 = sand.u32 %s118, 1
        %s422 = scalar_lea.sflag [#allocation4], %s421
        %s423 = sand.u32 %s118, 1
        %s424 = smul.addr %s423, 4
        %s425 = scalar_lea.vmem [#allocation7], %s424
        // Predicated region
        $region41: #{tpu_custom_call.1} parent=31 // pred_check
          %p426 = pneg %p128
        $region42: #{tpu_custom_call.1} parent=31 // pred_check_branch
          %428 = sbr.rel (%p426) target = $region44
        $region43: #{tpu_custom_call.1} parent=31 // pred_region
          %s430 = ssub.s32 64, 64
          %431 = vsyncadd %s422, %s430
          %s432 = sadd.s32 %s25, %s26
          %s433 = smul.addr %s432, 64
          %s434 = scalar_lea.hbm %s3, %s433
          %s436 = sshll.u32 %s425, 4
          %s437 = int_to_ptr.vmem [resolvable:$true] %s436
          %439 = dma.vmem_to_hbm [thread:$0]  %s437, 64, %s434, %s422
        $region44: #{tpu_custom_call.1} parent=31 // pred_fallthru
          _
      $region32: #{tpu_custom_call.1} parent=5 // pred_fallthru
        _
      %p440 = scmp.le.s32.totalorder 2, %s16
      // Predicated region
      $region45: #{tpu_custom_call.1} parent=5 // pred_check
        %p441 = pneg %p440
      $region46: #{tpu_custom_call.1} parent=5 // pred_check_branch
        %443 = sbr.rel (%p441) target = $region48
      $region47: #{tpu_custom_call.1} parent=5 // pred_region
        %s444 = ssub.s32 %s16, 2
        // Predicated region
        $region49: #{tpu_custom_call.1} parent=47 // pred_check
          %p445 = pneg %p134
        $region50: #{tpu_custom_call.1} parent=47 // pred_check_branch
          %447 = sbr.rel (%p445) target = $region52
        $region51: #{tpu_custom_call.1} parent=47 // pred_region
          %s448 = sand.u32 %s119, 1
          %s449 = scalar_lea.sflag [#allocation4], %s448
          %s450 = sand.u32 %s119, 1
          %s451 = smul.addr %s450, 4
          %s452 = scalar_lea.vmem [#allocation7], %s451
          %453 = dma.done %s449, 64
        $region52: #{tpu_custom_call.1} parent=47 // pred_fallthru
          _
      $region48: #{tpu_custom_call.1} parent=5 // pred_fallthru
        _
    $region6: #{tpu_custom_call.1} parent=1 // loop_footer
      %s20 = sadd.s32 1, %s16
    $region7: #{tpu_custom_call.1} parent=1 // loop_footer_branch
      %15 = sbr.rel target = $region3
    $region8: #{tpu_custom_call.1} parent=1 // loop_exit
      _
    %454 = vsyncpa [#allocation3], 1
    %s455 = scalar_lea.sflag [#allocation3], 1
    %456 = vsyncpa %s455, 1
    %457 = vsyncpa [#allocation6], 1
    %458 = vsyncpa [#allocation4], 1
    %s459 = scalar_lea.sflag [#allocation4], 1
    %460 = vsyncpa %s459, 1

</llo_original>
